<compile_context>
chip_gen: v5e
topology: v5e:2x2
jax: 0.10.0
libtpu: 0.0.40
codegen_flags: <defaults>
</compile_context>

<pallas_src>
import functools
import math

import jax
import jax.numpy as jnp
from jax.experimental import pallas as pl
from jax.experimental.pallas import tpu as pltpu

_LANES = 128


def _add_noise_kernel(inp_ref, noise_ref, w_ref, out_ref, *, heteroscedastic):
    # (tm, pack*lat_dim) @ (pack*lat_dim, pack*output_dim) on the MXU, fused
    # with the heteroscedastic multiply and residual add on the VPU.
    # The weight block's index_map is constant -> fetched once, held resident.
    x = inp_ref[...]
    mult = jnp.dot(noise_ref[...], w_ref[...],
                   preferred_element_type=jnp.float32).astype(x.dtype)
    if heteroscedastic:
        mult = x * mult
    out_ref[...] = (x + mult).astype(out_ref.dtype)


def _padded_lane_bytes(n_cols, itemsize):
    # VMEM cost of one row of a block: lanes pad up to a multiple of 128.
    return pl.cdiv(n_cols, _LANES) * _LANES * itemsize


def add_noise(inp, noise, W, *, heteroscedastic=True, donate_inp=False,
              max_rows_per_step=8192):
    """Pallas AddNoise.forward (add_dim = -1).

    inp:   (..., output_dim)
    noise: (..., lat_dim)   -- same leading dims as inp (fresh sample per call)
    W:     (output_dim, lat_dim)
    donate_inp: alias the output HBM buffer onto inp (each block is read before
      its output block is written, so this is safe); only a real win when the
      caller no longer needs inp (e.g. inside a larger jit).
    """
    orig_shape = inp.shape
    output_dim, lat_dim = W.shape
    assert orig_shape[-1] == output_dim, "last dim of inp must equal output_dim"
    assert noise.shape[:-1] == orig_shape[:-1] and noise.shape[-1] == lat_dim

    n_rows = math.prod(orig_shape[:-1])

    # --- lane-dense packing: fold `pack` consecutive rows into one row so the
    # last (lane) dim of inp/out becomes a multiple of 128.
    pack = 1
    if output_dim % _LANES != 0:
        cand = _LANES // math.gcd(output_dim, _LANES)
        if cand > 1 and n_rows % cand == 0:
            pack = cand
    n_packed = n_rows // pack
    pin = pack * output_dim          # packed inp/out lane width
    pno = pack * lat_dim             # packed noise lane width

    inp2 = inp.reshape(n_packed, pin)        # row-major: pure relayout
    noise2 = noise.reshape(n_packed, pno)

    wt = W.T                                  # (lat_dim, output_dim)
    if pack > 1:
        # Block-diagonal weight so the projection is computed directly in the
        # packed layout: w_blk[p*lat_dim+l, q*output_dim+o] = (p==q) * W[o, l].
        eye = jnp.eye(pack, dtype=wt.dtype)
        w_blk = jnp.einsum("pq,lo->plqo", eye, wt).reshape(pno, pin)
    else:
        w_blk = wt

    # --- row tile: large enough to hide the ~0.35us/step grid overhead, small
    # enough that the double-buffered inp/out/noise blocks fit comfortably in
    # scoped VMEM on every generation (v7x: 64 MiB physical per TC).
    in_itemsize = inp.dtype.itemsize
    row_vmem = (_padded_lane_bytes(pin, in_itemsize)                    # inp
                + _padded_lane_bytes(pin, in_itemsize)                  # out
                + _padded_lane_bytes(pno, noise.dtype.itemsize))        # noise
    vmem_budget = 24 * 1024 * 1024           # for the (x2 double-buffered) streams
    tm_cap = max(8, min(vmem_budget // (2 * row_vmem),
                        max(1, max_rows_per_step // pack)))
    if n_packed <= tm_cap:
        tm = n_packed                        # single full-array block
    else:
        tm = max(8, (tm_cap // 8) * 8)       # multiple of 8 sublanes

    grid = (pl.cdiv(n_packed, tm),)

    bytes_accessed = (2 * inp2.size * in_itemsize
                      + noise2.size * noise.dtype.itemsize
                      + w_blk.size * w_blk.dtype.itemsize)
    cost = pl.CostEstimate(
        flops=2 * n_rows * lat_dim * output_dim + 2 * n_rows * output_dim,
        transcendentals=0,
        bytes_accessed=bytes_accessed)

    out2 = pl.pallas_call(
        functools.partial(_add_noise_kernel, heteroscedastic=heteroscedastic),
        out_shape=jax.ShapeDtypeStruct((n_packed, pin), inp.dtype),
        grid_spec=pltpu.PrefetchScalarGridSpec(
            num_scalar_prefetch=0,
            grid=grid,
            in_specs=[
                pl.BlockSpec((tm, pin), lambda i: (i, 0)),
                pl.BlockSpec((tm, pno), lambda i: (i, 0)),
                # Constant block index: DMA'd once, not re-fetched per step.
                pl.BlockSpec((pno, pin), lambda i: (0, 0)),
            ],
            out_specs=pl.BlockSpec((tm, pin), lambda i: (i, 0)),
        ),
        compiler_params=pltpu.CompilerParams(
            # 1-D parallel row grid -> shards across v7x's 2 TensorCores.
            dimension_semantics=("parallel",),
            vmem_limit_bytes=32 * 1024 * 1024,
        ),
        cost_estimate=cost,
        input_output_aliases=({0: 0} if donate_inp else {}),
    )(inp2, noise2, w_blk)

    return out2.reshape(orig_shape)


def add_noise_ref(inp, noise, W, *, heteroscedastic=True):
    """Pure-JAX reference mirroring the PyTorch forward (add_dim=-1)."""
    mult = jnp.einsum("...l,ol->...o", noise, W)
    if heteroscedastic:
        mult = inp * mult
    return inp + mult


if __name__ == "__main__":
    # Module config (synthetic, deterministic init — no checkpoint loading).
    lat_dim = 4
    output_dim = 32
    B, S = 2, 8  # leading (batch, seq) dims; add_dim = -1

    key = jax.random.PRNGKey(0)
    k_w, k_x, k_z, k_x2, k_z2 = jax.random.split(key, 5)

    W = jax.random.normal(k_w, (output_dim, lat_dim), dtype=jnp.float32)
    x = jax.random.normal(k_x, (B, S, output_dim), dtype=jnp.float32)
    # The module samples fresh noise every forward (torch.randn); sampled here
    # deterministically from the PRNG key and fed to the kernel.
    z = jax.random.normal(k_z, (B, S, lat_dim), dtype=jnp.float32)

    out = add_noise(x, z, W, heteroscedastic=True)
    out = jax.block_until_ready(out)
    ref = add_noise_ref(x, z, W, heteroscedastic=True)
    assert out.shape == x.shape and out.dtype == x.dtype
    assert jnp.allclose(out, ref, atol=1e-5, rtol=1e-5), "mismatch vs reference"

    # Extra small check exercising the multi-step pipelined grid (including a
    # partial trailing block), input aliasing and heteroscedastic=False.
    x2 = jax.random.normal(k_x2, (4, 40, output_dim), dtype=jnp.float32)
    z2 = jax.random.normal(k_z2, (4, 40, lat_dim), dtype=jnp.float32)
    for het in (True, False):
        ref2 = add_noise_ref(x2, z2, W, heteroscedastic=het)
        out2 = add_noise(x2, z2, W, heteroscedastic=het, donate_inp=True,
                         max_rows_per_step=64)  # force grid > 1 at small size
        out2 = jax.block_until_ready(out2)
        assert jnp.allclose(out2, ref2, atol=1e-5, rtol=1e-5), "mismatch (grid>1)"

    print("KERNEL_OK")
</pallas_src>

<mosaic_0001>
module attributes {stable_mosaic.version = 11 : i64} {
  func.func @_add_noise_kernel(%arg0: i32, %arg1: memref<4x128xf32, #tpu.memory_space<vmem>>, %arg2: memref<4x16xf32, #tpu.memory_space<vmem>>, %arg3: memref<16x128xf32, #tpu.memory_space<vmem>>, %arg4: memref<4x128xf32, #tpu.memory_space<vmem>>) attributes {dimension_semantics = [#tpu.dimension_semantics<parallel>], iteration_bounds = array<i64: 1>, scalar_prefetch = 0 : i64, scratch_operands = 0 : i64, tpu.core_type = #tpu.core_type<tc>, window_params = [{transform_indices = @transform_0, window_bounds = array<i64: 4, 128>}, {transform_indices = @transform_1, window_bounds = array<i64: 4, 16>}, {pipeline_mode = #tpu.pipeline_mode<synchronous>, transform_indices = @transform_2, window_bounds = array<i64: 16, 128>}, {transform_indices = @transform_3, window_bounds = array<i64: 4, 128>}]} {
    %c0 = arith.constant 0 : index
    %c0_0 = arith.constant 0 : index
    %0 = vector.load %arg1[%c0, %c0_0] : memref<4x128xf32, #tpu.memory_space<vmem>>, vector<4x128xf32>
    %c0_1 = arith.constant 0 : index
    %c0_2 = arith.constant 0 : index
    %1 = vector.load %arg2[%c0_1, %c0_2] : memref<4x16xf32, #tpu.memory_space<vmem>>, vector<4x16xf32>
    %c0_3 = arith.constant 0 : index
    %c0_4 = arith.constant 0 : index
    %2 = vector.load %arg3[%c0_3, %c0_4] : memref<16x128xf32, #tpu.memory_space<vmem>>, vector<16x128xf32>
    %cst = arith.constant dense<0.000000e+00> : vector<4x128xf32>
    %3 = tpu.matmul %1, %2, %cst {dimension_numbers = #tpu.dot_dimension_numbers<[1], [0], [0], [1], [0, 0, 1, 1], [], []>} : vector<4x16xf32>, vector<16x128xf32>, vector<4x128xf32> -> vector<4x128xf32>
    %4 = arith.mulf %0, %3 : vector<4x128xf32>
    %5 = arith.addf %0, %4 : vector<4x128xf32>
    %c0_5 = arith.constant 0 : index
    %c0_6 = arith.constant 0 : index
    %6 = vector.load %arg4[%c0_5, %c0_6] : memref<4x128xf32, #tpu.memory_space<vmem>>, vector<4x128xf32>
    tpu.vector_store %arg4[%c0_5, %c0_6], %5 {strides = array<i32>} : memref<4x128xf32, #tpu.memory_space<vmem>>, vector<4x128xf32>,
    return
  }
  func.func @transform_0(%arg0: i32) -> (i32, i32) {
    %c0_i32 = arith.constant 0 : i32
    %c0_i32_0 = arith.constant 0 : i32
    return %arg0, %c0_i32 : i32, i32
  }
  func.func @transform_1(%arg0: i32) -> (i32, i32) {
    %c0_i32 = arith.constant 0 : i32
    %c0_i32_0 = arith.constant 0 : i32
    return %arg0, %c0_i32 : i32, i32
  }
  func.func @transform_2(%arg0: i32) -> (i32, i32) {
    %c0_i32 = arith.constant 0 : i32
    %c0_i32_0 = arith.constant 0 : i32
    %c0_i32_1 = arith.constant 0 : i32
    return %c0_i32, %c0_i32_0 : i32, i32
  }
  func.func @transform_3(%arg0: i32) -> (i32, i32) {
    %c0_i32 = arith.constant 0 : i32
    %c0_i32_0 = arith.constant 0 : i32
    return %arg0, %c0_i32 : i32, i32
  }
}

</mosaic_0001>

<llo_original>
// kernel: tpu_custom_call.1
$region0: #{tpu_custom_call.1}
  #allocation0 [shape = 'u32[]', space=smem, size = 0x4, offset = 0x4, fixed_abs, tag = 'smem constant byte address 0x4 - core index']
  #allocation1 [shape = 'u32[72,128]{1,0:T(1,128)}', space=vmem, size = 0x9000, scoped, tag = 'internal scratch']
  %s0 = inlined_call_operand.hbm [shape: f32[4,128], index: 0, kind: input, shape index: {}]
  %s1 = inlined_call_operand.hbm [shape: f32[4,16], index: 1, kind: input, shape index: {}]
  %s2 = inlined_call_operand.hbm [shape: f32[16,128], index: 2, kind: input, shape index: {}]
  %s3 = inlined_call_operand.hbm [shape: f32[4,128], index: 3, kind: output, shape index: {}]
  %s4 = sld [smem:[#allocation0]]
  $region34: #{tpu_custom_call.1} parent=0
    _
  %s6 = ssub.s32 1, %s4
  %s7 = scalar_select 0, %s6, %s4
  $region1: #{tpu_custom_call.1} parent=0
    #allocation2 [shape = 'u8[2048]{0}', space=vmem, size = 0x800, scoped, tag = 'input window, operand 0, single buffered']
    #allocation3 [shape = 's32[1]{0}', space=sflag, size = 0x4, scoped, tag = 'scoped memory for tpu_custom_call.1']
    #allocation4 [shape = 's32[1]{0}', space=sflag, size = 0x4, scoped, tag = 'scoped memory for tpu_custom_call.1']
    #allocation5 [shape = 'u8[2048]{0}', space=vmem, size = 0x800, scoped, tag = 'input window, operand 1, single buffered']
    #allocation6 [shape = 's32[1]{0}', space=sflag, size = 0x4, scoped, tag = 'scoped memory for tpu_custom_call.1']
    #allocation7 [shape = 'u8[8192]{0}', space=vmem, size = 0x2000, scoped, tag = 'input window, operand 2, single buffered']
    #allocation8 [shape = 'u8[2048]{0}', space=vmem, size = 0x800, scoped, tag = 'output window, operand 0, single buffered']
    %8 = vsyncpa [#allocation3], 0
    %9 = vsyncpa [#allocation6], 0
    %10 = vsyncpa [#allocation4], 0
    // Predicated region
    $region2: #{tpu_custom_call.1} parent=1 // pred_check
      _
    $region3: #{tpu_custom_call.1} parent=1 // pred_check_branch
      %12 = sbr.rel (0) target = $region5
    $region4: #{tpu_custom_call.1} parent=1 // pred_region
      %14 = vsyncadd [#allocation3], 0
      %s16 = sshll.u32 %s0, 4
      %s17 = int_to_ptr.hbm [resolvable:$true] %s16
      %s18 = sshll.u32 [#allocation2], 4
      %s19 = int_to_ptr.vmem [resolvable:$true] %s18
      %21 = dma.hbm_to_vmem [thread:$0]  %s17, 64, %s19, [#allocation3]
    $region5: #{tpu_custom_call.1} parent=1 // pred_fallthru
      _
    // Predicated region
    $region6: #{tpu_custom_call.1} parent=1 // pred_check
      _
    $region7: #{tpu_custom_call.1} parent=1 // pred_check_branch
      %23 = sbr.rel (0) target = $region9
    $region8: #{tpu_custom_call.1} parent=1 // pred_region
      %25 = vsyncadd [#allocation6], 0
      %s27 = sshll.u32 %s1, 4
      %s28 = int_to_ptr.hbm [resolvable:$true] %s27
      %s29 = sshll.u32 [#allocation5], 4
      %s30 = int_to_ptr.vmem [resolvable:$true] %s29
      %32 = dma.hbm_to_vmem [thread:$0]  %s28, 64, %s30, [#allocation6]
    $region9: #{tpu_custom_call.1} parent=1 // pred_fallthru
      _
    // Predicated region
    $region10: #{tpu_custom_call.1} parent=1 // pred_check
      _
    $region11: #{tpu_custom_call.1} parent=1 // pred_check_branch
      %34 = sbr.rel (0) target = $region13
    $region12: #{tpu_custom_call.1} parent=1 // pred_region
      %36 = vsyncadd [#allocation6], 0
      %s37 = sshll.u32 %s2, 4
      %s38 = int_to_ptr.hbm [resolvable:$true] %s37
      %s39 = sshll.u32 [#allocation7], 4
      %s40 = int_to_ptr.vmem [resolvable:$true] %s39
      %45 = dma.hbm_to_vmem [thread:$0]  %s38, 256, %s40, [#allocation6], 128, 128, 8
    $region13: #{tpu_custom_call.1} parent=1 // pred_fallthru
      _
    // Predicated region
    $region14: #{tpu_custom_call.1} parent=1 // pred_check
      _
    $region15: #{tpu_custom_call.1} parent=1 // pred_check_branch
      %47 = sbr.rel (0) target = $region17
    $region16: #{tpu_custom_call.1} parent=1 // pred_region
      %49 = dma.done [#allocation3], 64
    $region17: #{tpu_custom_call.1} parent=1 // pred_fallthru
      _
    // Predicated region
    $region18: #{tpu_custom_call.1} parent=1 // pred_check
      _
    $region19: #{tpu_custom_call.1} parent=1 // pred_check_branch
      %51 = sbr.rel (0) target = $region21
    $region20: #{tpu_custom_call.1} parent=1 // pred_region
      %53 = dma.done [#allocation6], 64
    $region21: #{tpu_custom_call.1} parent=1 // pred_fallthru
      _
    // Predicated region
    $region22: #{tpu_custom_call.1} parent=1 // pred_check
      _
    $region23: #{tpu_custom_call.1} parent=1 // pred_check_branch
      %55 = sbr.rel (0) target = $region25
    $region24: #{tpu_custom_call.1} parent=1 // pred_region
      %57 = dma.done [#allocation6], 256
    $region25: #{tpu_custom_call.1} parent=1 // pred_fallthru
      _
    %v58 = vld [vmem:[#allocation2] sm:$0xf]
    %v59 = vld [vmem:[#allocation5] sm:$0xf]
    %v60 = vld [vmem:[#allocation7] sm:$0xff]
    %v61 = vld [vmem:[#allocation7 + $0x8] sm:$0xff]
    %vm62 = vcmask 130048
    %v64 = vsel %vm62, %v59, 0
    %66 = vmatpush.msra.mxu0 0.0
    %67 = vmatpush.msra.mxu0 0.0
    %68 = vmatpush.msra.mxu0 0.0
    %69 = vmatpush.msra.mxu0 0.0
    %70 = vmatpush.msra.mxu0 0.0
    %71 = vmatpush.msra.mxu0 0.0
    %72 = vmatpush.msra.mxu0 0.0
    %73 = vmatpush.msra.mxu0 0.0
    %74 = vmatpush.msra.mxu0 0.0
    %75 = vmatpush.msra.mxu0 0.0
    %76 = vmatpush.msra.mxu0 0.0
    %77 = vmatpush.msra.mxu0 0.0
    %78 = vmatpush.msra.mxu0 0.0
    %79 = vmatpush.msra.mxu0 0.0
    %80 = vmatpush.msra.mxu0 %v61
    %81 = vmatpush.msra.mxu0 %v60
    %82 = vmatmul.f32.gmra.mxu0 %v64
    %v83 = vpop.f32.mrf.mxu0
    %v84 = vadd.f32 0.0, %v83
    %85 = vdwg.mxu0
    %v86 = vmul.f32 %v58, %v84
    %v87 = vadd.f32 %v58, %v86
    %88 = vst [vmem:[#allocation8] sm:$0xf] %v87
    // Predicated region
    $region26: #{tpu_custom_call.1} parent=1 // pred_check
      _
    $region27: #{tpu_custom_call.1} parent=1 // pred_check_branch
      %90 = sbr.rel (0) target = $region29
    $region28: #{tpu_custom_call.1} parent=1 // pred_region
      %92 = vsyncadd [#allocation4], 0
      %s94 = sshll.u32 [#allocation8], 4
      %s95 = int_to_ptr.vmem [resolvable:$true] %s94
      %s96 = sshll.u32 %s3, 4
      %s97 = int_to_ptr.hbm [resolvable:$true] %s96
      %99 = dma.vmem_to_hbm [thread:$0]  %s95, 64, %s97, [#allocation4]
    $region29: #{tpu_custom_call.1} parent=1 // pred_fallthru
      _
    // Predicated region
    $region30: #{tpu_custom_call.1} parent=1 // pred_check
      _
    $region31: #{tpu_custom_call.1} parent=1 // pred_check_branch
      %101 = sbr.rel (0) target = $region33
    $region32: #{tpu_custom_call.1} parent=1 // pred_region
      %103 = dma.done [#allocation4], 64
    $region33: #{tpu_custom_call.1} parent=1 // pred_fallthru
      _
    %104 = vsyncpa [#allocation3], 1
    %105 = vsyncpa [#allocation6], 1
    %106 = vsyncpa [#allocation4], 1

</llo_original>
